<compile_context>
chip_gen: v6e
topology: v6e:2x2x1
jax: 0.10.0
libtpu: 0.0.40
codegen_flags: <defaults>
</compile_context>

<pallas_src>
import functools
import math

import jax
import jax.numpy as jnp
from jax.experimental import pallas as pl
from jax.experimental.pallas import tpu as pltpu


# ----------------------------- cache construction (glue, plain JAX) ----------

def _compute_inv_freq(rescale_factors, base, rotary_dim):
    rescale = jnp.asarray(rescale_factors, dtype=jnp.float32)
    exponents = jnp.arange(0, rotary_dim, 2, dtype=jnp.float32) / rotary_dim
    return 1.0 / (rescale * (base ** exponents))


def _compute_cos_sin_cache(max_position_embeddings, rescale_factors, mscale,
                           base, rotary_dim):
    inv_freq = _compute_inv_freq(rescale_factors, base, rotary_dim)
    t = jnp.arange(max_position_embeddings, dtype=jnp.float32)
    freqs = jnp.einsum("i,j->ij", t, inv_freq)
    cos = jnp.cos(freqs) * mscale
    sin = jnp.sin(freqs) * mscale
    return jnp.concatenate([cos, sin], axis=-1)  # [max_pos, rotary_dim]


def build_long_short_cache(head_size, rotary_dim, max_position_embeddings,
                           original_max_position_embeddings, base,
                           short_factor, long_factor,
                           short_mscale=None, long_mscale=None,
                           dtype=jnp.float32):
    scale = max_position_embeddings / original_max_position_embeddings
    if scale <= 1.0:
        scaling_factor = 1.0
    else:
        scaling_factor = math.sqrt(
            1 + math.log(scale) / math.log(original_max_position_embeddings))
    if short_mscale is None:
        short_mscale = scaling_factor
    if long_mscale is None:
        long_mscale = scaling_factor

    short_cache = _compute_cos_sin_cache(
        original_max_position_embeddings, short_factor, short_mscale,
        base, rotary_dim).astype(dtype)
    long_cache = _compute_cos_sin_cache(
        max_position_embeddings, long_factor, long_mscale,
        base, rotary_dim).astype(dtype)
    return jnp.concatenate([short_cache, long_cache], axis=0)


# ----------------------------- Pallas kernel ---------------------------------

def _rope_kernel(cs_ref, q_ref, k_ref, qo_ref, ko_ref, *,
                 head_size, rotary_dim):
    half = rotary_dim // 2
    # cos/sin kept in float32; broadcast over the head axis hoisted once/tile.
    cos = cs_ref[:, 0:half][:, None, :]                 # (t_tile, 1, half) f32
    sin = cs_ref[:, half:rotary_dim][:, None, :]        # (t_tile, 1, half) f32

    def apply(x_ref, o_ref):
        # x_ref/o_ref: (t_tile, n_heads, head_size) — vectorized over heads.
        x1 = x_ref[:, :, 0:half].astype(jnp.float32)
        x2 = x_ref[:, :, half:rotary_dim].astype(jnp.float32)
        # neox rotation: out = [x1*cos - x2*sin, x2*cos + x1*sin]
        o_ref[:, :, 0:half] = (x1 * cos - x2 * sin).astype(o_ref.dtype)
        o_ref[:, :, half:rotary_dim] = (x2 * cos + x1 * sin).astype(o_ref.dtype)
        if rotary_dim < head_size:
            # pass-through (non-rotary) portion of the head
            o_ref[:, :, rotary_dim:head_size] = x_ref[:, :, rotary_dim:head_size]

    apply(q_ref, qo_ref)
    apply(k_ref, ko_ref)


def _round_up(x, m):
    return ((x + m - 1) // m) * m


def phi3_longrope_forward(positions, query, key, cache,
                          original_max_position_embeddings,
                          head_size, rotary_dim, offsets=None, t_tile=None):
    """Replicates Phi3LongRoPEScaledRotaryEmbedding.forward."""
    T = positions.shape[0]
    qdim = query.shape[-1]
    kdim = key.shape[-1]
    num_q_heads = qdim // head_size
    num_kv_heads = kdim // head_size

    # long/short cache selection (global reduction) + per-token gather: glue.
    k_thr = original_max_position_embeddings
    any_long = jnp.any(positions > k_thr)
    long_prompt_offset = jnp.where(any_long, k_thr, 0).astype(positions.dtype)
    idx = positions + long_prompt_offset
    if offsets is not None:
        idx = idx + offsets
    # Keep the trig table in float32 inside the kernel (no double rounding).
    cos_sin = jnp.take(cache, idx, axis=0).astype(jnp.float32)  # [T, rotary_dim]

    # --- token-tile selection: fit comfortably in the default scoped VMEM ----
    itemsize = jnp.dtype(query.dtype).itemsize
    # double-buffered (in + aliased out) q/k blocks + double-buffered cos/sin
    row_bytes = 2 * 2 * (qdim + kdim) * itemsize + 2 * rotary_dim * 4
    budget = 20 * 1024 * 1024
    if t_tile is None:
        t_tile = max(16, min(1024, (budget // row_bytes) // 16 * 16))
    t_tile = min(t_tile, _round_up(T, 16))   # multiple of 16 (bf16-safe sublanes)
    T_pad = _round_up(T, t_tile)
    num_tiles = T_pad // t_tile

    q3 = query.reshape(T, num_q_heads, head_size)
    k3 = key.reshape(T, num_kv_heads, head_size)
    if T_pad != T:
        pad = T_pad - T
        q3 = jnp.pad(q3, ((0, pad), (0, 0), (0, 0)))
        k3 = jnp.pad(k3, ((0, pad), (0, 0), (0, 0)))
        cos_sin = jnp.pad(cos_sin, ((0, pad), (0, 0)))

    kernel = functools.partial(_rope_kernel, head_size=head_size,
                               rotary_dim=rotary_dim)

    cost = pl.CostEstimate(
        flops=int(6 * T * (num_q_heads + num_kv_heads) * rotary_dim),
        transcendentals=0,
        bytes_accessed=int(2 * T * (qdim + kdim) * itemsize + T * rotary_dim * 4),
    )

    q_out, k_out = pl.pallas_call(
        kernel,
        out_shape=(
            jax.ShapeDtypeStruct((T_pad, num_q_heads, head_size), query.dtype),
            jax.ShapeDtypeStruct((T_pad, num_kv_heads, head_size), key.dtype),
        ),
        grid=(num_tiles,),
        in_specs=[
            pl.BlockSpec((t_tile, rotary_dim), lambda i: (i, 0)),
            pl.BlockSpec((t_tile, num_q_heads, head_size), lambda i: (i, 0, 0)),
            pl.BlockSpec((t_tile, num_kv_heads, head_size), lambda i: (i, 0, 0)),
        ],
        out_specs=(
            pl.BlockSpec((t_tile, num_q_heads, head_size), lambda i: (i, 0, 0)),
            pl.BlockSpec((t_tile, num_kv_heads, head_size), lambda i: (i, 0, 0)),
        ),
        input_output_aliases={1: 0, 2: 1},   # in-place RoPE on q/k buffers
        compiler_params=pltpu.CompilerParams(
            dimension_semantics=("parallel",),
            vmem_limit_bytes=32 * 1024 * 1024,
        ),
        cost_estimate=cost,
    )(cos_sin, q3, k3)

    q_out = q_out[:T].reshape(T, qdim)
    k_out = k_out[:T].reshape(T, kdim)
    return q_out, k_out


# ----------------------------- pure-JAX reference ----------------------------

def _rotate_neox(x):
    d = x.shape[-1]
    x1 = x[..., :d // 2]
    x2 = x[..., d // 2:]
    return jnp.concatenate([-x2, x1], axis=-1)


def ref_forward(positions, query, key, cache,
                original_max_position_embeddings, head_size, rotary_dim,
                offsets=None):
    T = positions.shape[0]
    q = query.reshape(T, -1, head_size)
    kk = key.reshape(T, -1, head_size)
    thr = original_max_position_embeddings
    any_long = jnp.any(positions > thr)
    off = jnp.where(any_long, thr, 0).astype(positions.dtype)
    idx = positions + off
    if offsets is not None:
        idx = idx + offsets
    cos_sin = jnp.take(cache, idx, axis=0)
    half = rotary_dim // 2
    cos = cos_sin[:, :half]
    sin = cos_sin[:, half:]
    cos = jnp.tile(cos, (1, 2))[:, None, :]
    sin = jnp.tile(sin, (1, 2))[:, None, :]

    def rot(x):
        xr = x[..., :rotary_dim]
        xp = x[..., rotary_dim:]
        xr = xr * cos + _rotate_neox(xr) * sin
        return jnp.concatenate([xr, xp], axis=-1)

    return rot(q).reshape(T, -1), rot(kk).reshape(T, -1)


# ----------------------------- main ------------------------------------------

def _run_case(seed, T, head_size, rotary_dim, num_q_heads, num_kv_heads,
              max_position_embeddings, original_max_position_embeddings, base):
    half = rotary_dim // 2
    short_factor = [1.0 + 0.01 * i for i in range(half)]
    long_factor = [2.0 + 0.05 * i for i in range(half)]

    cache = build_long_short_cache(
        head_size, rotary_dim, max_position_embeddings,
        original_max_position_embeddings, base,
        short_factor, long_factor, dtype=jnp.float32)

    key0 = jax.random.PRNGKey(seed)
    k1, k2, k3 = jax.random.split(key0, 3)
    positions = jax.random.randint(
        k1, (T,), 0, max_position_embeddings, dtype=jnp.int32)
    query = jax.random.normal(k2, (T, num_q_heads * head_size), jnp.float32)
    key_t = jax.random.normal(k3, (T, num_kv_heads * head_size), jnp.float32)

    # Reference computed first (kernel outputs alias their inputs).
    q_ref, k_ref = ref_forward(
        positions, query, key_t, cache,
        original_max_position_embeddings, head_size, rotary_dim)

    q_out, k_out = phi3_longrope_forward(
        positions, query, key_t, cache,
        original_max_position_embeddings, head_size, rotary_dim)
    q_out = jax.block_until_ready(q_out)
    k_out = jax.block_until_ready(k_out)

    assert jnp.allclose(q_out, q_ref, atol=1e-5, rtol=1e-5), "query mismatch"
    assert jnp.allclose(k_out, k_ref, atol=1e-5, rtol=1e-5), "key mismatch"


if __name__ == "__main__":
    # Full-rotary case (rotary_dim == head_size), consistent with the module.
    _run_case(seed=0, T=8, head_size=32, rotary_dim=32,
              num_q_heads=4, num_kv_heads=2,
              max_position_embeddings=64,
              original_max_position_embeddings=16, base=10000)

    # Partial-rotary case exercises the pass-through branch.
    _run_case(seed=0, T=8, head_size=32, rotary_dim=16,
              num_q_heads=4, num_kv_heads=2,
              max_position_embeddings=64,
              original_max_position_embeddings=16, base=10000)

    print("KERNEL_OK")
</pallas_src>

<mosaic_0001>
module attributes {stable_mosaic.version = 11 : i64} {
  func.func @_rope_kernel(%arg0: i32, %arg1: memref<16x32xf32, #tpu.memory_space<vmem>>, %arg2: memref<16x4x32xf32, #tpu.memory_space<vmem>>, %arg3: memref<16x2x32xf32, #tpu.memory_space<vmem>>, %arg4: memref<16x4x32xf32, #tpu.memory_space<vmem>>, %arg5: memref<16x2x32xf32, #tpu.memory_space<vmem>>) attributes {dimension_semantics = [#tpu.dimension_semantics<parallel>], iteration_bounds = array<i64: 1>, scalar_prefetch = 0 : i64, scratch_operands = 0 : i64, tpu.core_type = #tpu.core_type<tc>, window_params = [{transform_indices = @transform_0, window_bounds = array<i64: 16, 32>}, {transform_indices = @transform_1, window_bounds = array<i64: 16, 4, 32>}, {transform_indices = @transform_2, window_bounds = array<i64: 16, 2, 32>}, {transform_indices = @transform_3, window_bounds = array<i64: 16, 4, 32>}, {transform_indices = @transform_4, window_bounds = array<i64: 16, 2, 32>}]} {
    %c0 = arith.constant 0 : index
    %c0_0 = arith.constant 0 : index
    %0 = vector.load %arg1[%c0, %c0_0] : memref<16x32xf32, #tpu.memory_space<vmem>>, vector<16x16xf32>
    %1 = vector.shape_cast %0 : vector<16x16xf32> to vector<16x1x16xf32>
    %c0_1 = arith.constant 0 : index
    %c16 = arith.constant 16 : index
    %2 = vector.load %arg1[%c0_1, %c16] : memref<16x32xf32, #tpu.memory_space<vmem>>, vector<16x16xf32>
    %3 = vector.shape_cast %2 : vector<16x16xf32> to vector<16x1x16xf32>
    %c0_2 = arith.constant 0 : index
    %c0_3 = arith.constant 0 : index
    %c0_4 = arith.constant 0 : index
    %4 = vector.load %arg2[%c0_2, %c0_3, %c0_4] : memref<16x4x32xf32, #tpu.memory_space<vmem>>, vector<16x4x16xf32>
    %c0_5 = arith.constant 0 : index
    %c0_6 = arith.constant 0 : index
    %c16_7 = arith.constant 16 : index
    %5 = vector.load %arg2[%c0_5, %c0_6, %c16_7] : memref<16x4x32xf32, #tpu.memory_space<vmem>>, vector<16x4x16xf32>
    %6 = vector.broadcast %1 : vector<16x1x16xf32> to vector<16x4x16xf32>
    %7 = arith.mulf %4, %6 : vector<16x4x16xf32>
    %8 = vector.broadcast %3 : vector<16x1x16xf32> to vector<16x4x16xf32>
    %9 = arith.mulf %5, %8 : vector<16x4x16xf32>
    %10 = arith.subf %7, %9 : vector<16x4x16xf32>
    %c0_8 = arith.constant 0 : index
    %c0_9 = arith.constant 0 : index
    %c0_10 = arith.constant 0 : index
    %11 = vector.load %arg4[%c0_8, %c0_9, %c0_10] : memref<16x4x32xf32, #tpu.memory_space<vmem>>, vector<16x4x16xf32>
    tpu.vector_store %arg4[%c0_8, %c0_9, %c0_10], %10 {strides = array<i32>} : memref<16x4x32xf32, #tpu.memory_space<vmem>>, vector<16x4x16xf32>,
    %12 = vector.broadcast %1 : vector<16x1x16xf32> to vector<16x4x16xf32>
    %13 = arith.mulf %5, %12 : vector<16x4x16xf32>
    %14 = vector.broadcast %3 : vector<16x1x16xf32> to vector<16x4x16xf32>
    %15 = arith.mulf %4, %14 : vector<16x4x16xf32>
    %16 = arith.addf %13, %15 : vector<16x4x16xf32>
    %c0_11 = arith.constant 0 : index
    %c0_12 = arith.constant 0 : index
    %c16_13 = arith.constant 16 : index
    %17 = vector.load %arg4[%c0_11, %c0_12, %c16_13] : memref<16x4x32xf32, #tpu.memory_space<vmem>>, vector<16x4x16xf32>
    tpu.vector_store %arg4[%c0_11, %c0_12, %c16_13], %16 {strides = array<i32>} : memref<16x4x32xf32, #tpu.memory_space<vmem>>, vector<16x4x16xf32>,
    %c0_14 = arith.constant 0 : index
    %c0_15 = arith.constant 0 : index
    %c0_16 = arith.constant 0 : index
    %18 = vector.load %arg3[%c0_14, %c0_15, %c0_16] : memref<16x2x32xf32, #tpu.memory_space<vmem>>, vector<16x2x16xf32>
    %c0_17 = arith.constant 0 : index
    %c0_18 = arith.constant 0 : index
    %c16_19 = arith.constant 16 : index
    %19 = vector.load %arg3[%c0_17, %c0_18, %c16_19] : memref<16x2x32xf32, #tpu.memory_space<vmem>>, vector<16x2x16xf32>
    %20 = vector.broadcast %1 : vector<16x1x16xf32> to vector<16x2x16xf32>
    %21 = arith.mulf %18, %20 : vector<16x2x16xf32>
    %22 = vector.broadcast %3 : vector<16x1x16xf32> to vector<16x2x16xf32>
    %23 = arith.mulf %19, %22 : vector<16x2x16xf32>
    %24 = arith.subf %21, %23 : vector<16x2x16xf32>
    %c0_20 = arith.constant 0 : index
    %c0_21 = arith.constant 0 : index
    %c0_22 = arith.constant 0 : index
    %25 = vector.load %arg5[%c0_20, %c0_21, %c0_22] : memref<16x2x32xf32, #tpu.memory_space<vmem>>, vector<16x2x16xf32>
    tpu.vector_store %arg5[%c0_20, %c0_21, %c0_22], %24 {strides = array<i32>} : memref<16x2x32xf32, #tpu.memory_space<vmem>>, vector<16x2x16xf32>,
    %26 = vector.broadcast %1 : vector<16x1x16xf32> to vector<16x2x16xf32>
    %27 = arith.mulf %19, %26 : vector<16x2x16xf32>
    %28 = vector.broadcast %3 : vector<16x1x16xf32> to vector<16x2x16xf32>
    %29 = arith.mulf %18, %28 : vector<16x2x16xf32>
    %30 = arith.addf %27, %29 : vector<16x2x16xf32>
    %c0_23 = arith.constant 0 : index
    %c0_24 = arith.constant 0 : index
    %c16_25 = arith.constant 16 : index
    %31 = vector.load %arg5[%c0_23, %c0_24, %c16_25] : memref<16x2x32xf32, #tpu.memory_space<vmem>>, vector<16x2x16xf32>
    tpu.vector_store %arg5[%c0_23, %c0_24, %c16_25], %30 {strides = array<i32>} : memref<16x2x32xf32, #tpu.memory_space<vmem>>, vector<16x2x16xf32>,
    return
  }
  func.func @transform_0(%arg0: i32) -> (i32, i32) {
    %c0_i32 = arith.constant 0 : i32
    %c0_i32_0 = arith.constant 0 : i32
    return %arg0, %c0_i32 : i32, i32
  }
  func.func @transform_1(%arg0: i32) -> (i32, i32, i32) {
    %c0_i32 = arith.constant 0 : i32
    %c0_i32_0 = arith.constant 0 : i32
    %c0_i32_1 = arith.constant 0 : i32
    return %arg0, %c0_i32, %c0_i32_0 : i32, i32, i32
  }
  func.func @transform_2(%arg0: i32) -> (i32, i32, i32) {
    %c0_i32 = arith.constant 0 : i32
    %c0_i32_0 = arith.constant 0 : i32
    %c0_i32_1 = arith.constant 0 : i32
    return %arg0, %c0_i32, %c0_i32_0 : i32, i32, i32
  }
  func.func @transform_3(%arg0: i32) -> (i32, i32, i32) {
    %c0_i32 = arith.constant 0 : i32
    %c0_i32_0 = arith.constant 0 : i32
    %c0_i32_1 = arith.constant 0 : i32
    return %arg0, %c0_i32, %c0_i32_0 : i32, i32, i32
  }
  func.func @transform_4(%arg0: i32) -> (i32, i32, i32) {
    %c0_i32 = arith.constant 0 : i32
    %c0_i32_0 = arith.constant 0 : i32
    %c0_i32_1 = arith.constant 0 : i32
    return %arg0, %c0_i32, %c0_i32_0 : i32, i32, i32
  }
}

</mosaic_0001>

<llo_original>
// kernel: tpu_custom_call.1
$region0: #{tpu_custom_call.1}
  #allocation0 [shape = 'u32[]', space=smem, size = 0x4, offset = 0x4, fixed_abs, tag = 'smem constant byte address 0x4 - core index']
  #allocation1 [shape = 'u32[144,128]{1,0:T(1,128)}', space=vmem, size = 0x12000, scoped, tag = 'internal scratch']
  %s0 = inlined_call_operand.vmem [shape: f32[16,32], index: 0, kind: input, shape index: {}]
  %s1 = inlined_call_operand.hbm [shape: f32[16,4,32], index: 1, kind: input, shape index: {}, may-alias: {1,3}]
  %s2 = inlined_call_operand.hbm [shape: f32[16,2,32], index: 2, kind: input, shape index: {}, may-alias: {2,4}]
  %s3 = inlined_call_operand.hbm [shape: f32[16,4,32], index: 3, kind: output, shape index: {0}, may-alias: {1,3}]
  %s4 = inlined_call_operand.hbm [shape: f32[16,2,32], index: 4, kind: output, shape index: {1}, may-alias: {2,4}]
  %5 = xla_tuple %s3, %s4
  %s6 = sld [smem:[#allocation0]]
  $region38: #{tpu_custom_call.1} parent=0
    _
  %s8 = ssub.s32 1, %s6
  %s9 = scalar_select 0, %s8, %s6
  $region1: #{tpu_custom_call.1} parent=0
    #allocation2 [shape = 'u8[32768]{0}', space=vmem, size = 0x8000, scoped, tag = 'input window, operand 1, single buffered']
    #allocation3 [shape = 's32[1]{0}', space=sflag, size = 0x4, scoped, tag = 'scoped memory for tpu_custom_call.1']
    #allocation4 [shape = 's32[1]{0}', space=sflag, size = 0x4, scoped, tag = 'scoped memory for tpu_custom_call.1']
    #allocation5 [shape = 'u8[16384]{0}', space=vmem, size = 0x4000, scoped, tag = 'input window, operand 2, single buffered']
    #allocation6 [shape = 's32[1]{0}', space=sflag, size = 0x4, scoped, tag = 'scoped memory for tpu_custom_call.1']
    #allocation7 [shape = 'u8[32768]{0}', space=vmem, size = 0x8000, scoped, tag = 'output window, operand 0, single buffered']
    #allocation8 [shape = 'u8[16384]{0}', space=vmem, size = 0x4000, scoped, tag = 'output window, operand 1, single buffered']
    #allocation9 [shape = 's32[1]{0}', space=sflag, size = 0x4, scoped, tag = 'scoped memory for tpu_custom_call.1']
    %10 = vsyncpa [#allocation3], 0
    %11 = vsyncpa [#allocation6], 0
    %12 = vsyncpa [#allocation4], 0
    %13 = vsyncpa [#allocation9], 0
    // Predicated region
    $region2: #{tpu_custom_call.1} parent=1 // pred_check
      _
    $region3: #{tpu_custom_call.1} parent=1 // pred_check_branch
      %15 = sbr.rel (0) target = $region5
    $region4: #{tpu_custom_call.1} parent=1 // pred_region
      _
    $region5: #{tpu_custom_call.1} parent=1 // pred_fallthru
      _
    // Predicated region
    $region6: #{tpu_custom_call.1} parent=1 // pred_check
      _
    $region7: #{tpu_custom_call.1} parent=1 // pred_check_branch
      %17 = sbr.rel (0) target = $region9
    $region8: #{tpu_custom_call.1} parent=1 // pred_region
      %s19 = ssub.s32 1024, 1024
      %20 = vsyncadd [#allocation3], %s19
      %s21 = sshll.u32 [#allocation2], 4
      %s22 = int_to_ptr.vmem [resolvable:$true] %s21
      %27 = dma.hbm_to_vmem [thread:$0]  %s1, 1024, %s22, [#allocation3], 64, 64, 4
    $region9: #{tpu_custom_call.1} parent=1 // pred_fallthru
      _
    // Predicated region
    $region10: #{tpu_custom_call.1} parent=1 // pred_check
      _
    $region11: #{tpu_custom_call.1} parent=1 // pred_check_branch
      %29 = sbr.rel (0) target = $region13
    $region12: #{tpu_custom_call.1} parent=1 // pred_region
      %s31 = ssub.s32 512, 512
      %32 = vsyncadd [#allocation6], %s31
      %s33 = sshll.u32 [#allocation5], 4
      %s34 = int_to_ptr.vmem [resolvable:$true] %s33
      %39 = dma.hbm_to_vmem [thread:$0]  %s2, 512, %s34, [#allocation6], 32, 32, 2
    $region13: #{tpu_custom_call.1} parent=1 // pred_fallthru
      _
    // Predicated region
    $region14: #{tpu_custom_call.1} parent=1 // pred_check
      _
    $region15: #{tpu_custom_call.1} parent=1 // pred_check_branch
      %41 = sbr.rel (0) target = $region17
    $region16: #{tpu_custom_call.1} parent=1 // pred_region
      %42 = dma.done [#allocation3], 1024
    $region17: #{tpu_custom_call.1} parent=1 // pred_fallthru
      _
    // Predicated region
    $region18: #{tpu_custom_call.1} parent=1 // pred_check
      _
    $region19: #{tpu_custom_call.1} parent=1 // pred_check_branch
      %44 = sbr.rel (0) target = $region21
    $region20: #{tpu_custom_call.1} parent=1 // pred_region
      %45 = dma.done [#allocation6], 512
    $region21: #{tpu_custom_call.1} parent=1 // pred_fallthru
      _
    %v46 = vld [vmem:[%s0] sm:$0xff]
    %v47 = vld [vmem:[%s0 + $0x8] sm:$0xff]
    %v50 = vcombine.high %v46, %v46
    %v52 = vunpack.c.l.s4 1966171168
    %v53 = vunpack.c.0.s8 %v52
    %v54 = vlaneseq
    %v55 = vshrl.u32 %v54, 7
    %v56 = vsub.s32 %v53, %v55
    %v57 = vrot.slane %v46, %v56
    %v59 = vunpack.c.l.s4 1966171168
    %v60 = vunpack.c.0.s8 %v59
    %v61 = vlaneseq
    %v62 = vshrl.u32 %v61, 7
    %v63 = vsub.s32 %v60, %v62
    %v64 = vrot.slane %v50, %v63
    %v65 = vcombine.high %v57, %v57
    %v66 = vcombine.high %v64, %v64
    %v68 = vunpack.c.l.s4 1966171168
    %v69 = vunpack.c.0.s8 %v68
    %v70 = vlaneseq
    %v71 = vshrl.u32 %v70, 7
    %v72 = vsub.s32 %v69, %v71
    %v73 = vrot.slane %v57, %v72
    %v75 = vunpack.c.l.s4 1966171168
    %v76 = vunpack.c.0.s8 %v75
    %v77 = vlaneseq
    %v78 = vshrl.u32 %v77, 7
    %v79 = vsub.s32 %v76, %v78
    %v80 = vrot.slane %v64, %v79
    %v82 = vunpack.c.l.s4 1966171168
    %v83 = vunpack.c.0.s8 %v82
    %v84 = vlaneseq
    %v85 = vshrl.u32 %v84, 7
    %v86 = vsub.s32 %v83, %v85
    %v87 = vrot.slane %v65, %v86
    %v89 = vunpack.c.l.s4 1966171168
    %v90 = vunpack.c.0.s8 %v89
    %v91 = vlaneseq
    %v92 = vshrl.u32 %v91, 7
    %v93 = vsub.s32 %v90, %v92
    %v94 = vrot.slane %v66, %v93
    %v95 = vcombine.high %v73, %v73
    %v96 = vcombine.high %v80, %v80
    %v97 = vcombine.high %v87, %v87
    %v98 = vcombine.high %v94, %v94
    %v99 = vcombine.high %v47, %v47
    %v101 = vunpack.c.l.s4 1966171168
    %v102 = vunpack.c.0.s8 %v101
    %v103 = vlaneseq
    %v104 = vshrl.u32 %v103, 7
    %v105 = vsub.s32 %v102, %v104
    %v106 = vrot.slane %v47, %v105
    %v108 = vunpack.c.l.s4 1966171168
    %v109 = vunpack.c.0.s8 %v108
    %v110 = vlaneseq
    %v111 = vshrl.u32 %v110, 7
    %v112 = vsub.s32 %v109, %v111
    %v113 = vrot.slane %v99, %v112
    %v114 = vcombine.high %v106, %v106
    %v115 = vcombine.high %v113, %v113
    %v117 = vunpack.c.l.s4 1966171168
    %v118 = vunpack.c.0.s8 %v117
    %v119 = vlaneseq
    %v120 = vshrl.u32 %v119, 7
    %v121 = vsub.s32 %v118, %v120
    %v122 = vrot.slane %v106, %v121
    %v124 = vunpack.c.l.s4 1966171168
    %v125 = vunpack.c.0.s8 %v124
    %v126 = vlaneseq
    %v127 = vshrl.u32 %v126, 7
    %v128 = vsub.s32 %v125, %v127
    %v129 = vrot.slane %v113, %v128
    %v131 = vunpack.c.l.s4 1966171168
    %v132 = vunpack.c.0.s8 %v131
    %v133 = vlaneseq
    %v134 = vshrl.u32 %v133, 7
    %v135 = vsub.s32 %v132, %v134
    %v136 = vrot.slane %v114, %v135
    %v138 = vunpack.c.l.s4 1966171168
    %v139 = vunpack.c.0.s8 %v138
    %v140 = vlaneseq
    %v141 = vshrl.u32 %v140, 7
    %v142 = vsub.s32 %v139, %v141
    %v143 = vrot.slane %v115, %v142
    %v144 = vcombine.high %v122, %v122
    %v145 = vcombine.high %v129, %v129
    %v146 = vcombine.high %v136, %v136
    %v147 = vcombine.high %v143, %v143
    %v148 = vld [vmem:[#allocation2] sm:$0xf]
    %v149 = vld [vmem:[#allocation2 + $0x4] sm:$0xf]
    %v150 = vld [vmem:[#allocation2 + $0x8] sm:$0xf]
    %v151 = vld [vmem:[#allocation2 + $0xc] sm:$0xf]
    %v152 = vld [vmem:[#allocation2 + $0x10] sm:$0xf]
    %v153 = vld [vmem:[#allocation2 + $0x14] sm:$0xf]
    %v154 = vld [vmem:[#allocation2 + $0x18] sm:$0xf]
    %v155 = vld [vmem:[#allocation2 + $0x1c] sm:$0xf]
    %v156 = vld [vmem:[#allocation2 + $0x20] sm:$0xf]
    %v157 = vld [vmem:[#allocation2 + $0x24] sm:$0xf]
    %v158 = vld [vmem:[#allocation2 + $0x28] sm:$0xf]
    %v159 = vld [vmem:[#allocation2 + $0x2c] sm:$0xf]
    %v160 = vld [vmem:[#allocation2 + $0x30] sm:$0xf]
    %v161 = vld [vmem:[#allocation2 + $0x34] sm:$0xf]
    %v162 = vld [vmem:[#allocation2 + $0x38] sm:$0xf]
    %v163 = vld [vmem:[#allocation2 + $0x3c] sm:$0xf]
    %v164 = vlaneseq
    %v165 = vshrl.u32 %v164, 7
    %v166 = vsub.s32 0, %v165
    %v167 = vrot.slane %v73, %v166
    %v168 = vlaneseq
    %v169 = vshrl.u32 %v168, 7
    %v170 = vsub.s32 0, %v169
    %v171 = vrot.slane %v87, %v170
    %v172 = vlaneseq
    %v173 = vshrl.u32 %v172, 7
    %v174 = vsub.s32 0, %v173
    %v175 = vrot.slane %v95, %v174
    %v176 = vlaneseq
    %v177 = vshrl.u32 %v176, 7
    %v178 = vsub.s32 0, %v177
    %v179 = vrot.slane %v97, %v178
    %v180 = vlaneseq
    %v181 = vshrl.u32 %v180, 7
    %v182 = vsub.s32 0, %v181
    %v183 = vrot.slane %v80, %v182
    %v184 = vlaneseq
    %v185 = vshrl.u32 %v184, 7
    %v186 = vsub.s32 0, %v185
    %v187 = vrot.slane %v94, %v186
    %v188 = vlaneseq
    %v189 = vshrl.u32 %v188, 7
    %v190 = vsub.s32 0, %v189
    %v191 = vrot.slane %v96, %v190
    %v192 = vlaneseq
    %v193 = vshrl.u32 %v192, 7
    %v194 = vsub.s32 0, %v193
    %v195 = vrot.slane %v98, %v194
    %v196 = vlaneseq
    %v197 = vshrl.u32 %v196, 7
    %v198 = vsub.s32 0, %v197
    %v199 = vrot.slane %v122, %v198
    %v200 = vlaneseq
    %v201 = vshrl.u32 %v200, 7
    %v202 = vsub.s32 0, %v201
    %v203 = vrot.slane %v136, %v202
    %v204 = vlaneseq
    %v205 = vshrl.u32 %v204, 7
    %v206 = vsub.s32 0, %v205
    %v207 = vrot.slane %v144, %v206
    %v208 = vlaneseq
    %v209 = vshrl.u32 %v208, 7
    %v210 = vsub.s32 0, %v209
    %v211 = vrot.slane %v146, %v210
    %v212 = vlaneseq
    %v213 = vshrl.u32 %v212, 7
    %v214 = vsub.s32 0, %v213
    %v215 = vrot.slane %v129, %v214
    %v216 = vlaneseq
    %v217 = vshrl.u32 %v216, 7
    %v218 = vsub.s32 0, %v217
    %v219 = vrot.slane %v143, %v218
    %v220 = vlaneseq
    %v221 = vshrl.u32 %v220, 7
    %v222 = vsub.s32 0, %v221
    %v223 = vrot.slane %v145, %v222
    %v224 = vlaneseq
    %v225 = vshrl.u32 %v224, 7
    %v226 = vsub.s32 0, %v225
    %v227 = vrot.slane %v147, %v226
    %v244 = vmul.f32 %v148, %v167
    %v245 = vmul.f32 %v149, %v171
    %v246 = vmul.f32 %v150, %v175
    %v247 = vmul.f32 %v151, %v179
    %v248 = vmul.f32 %v152, %v183
    %v249 = vmul.f32 %v153, %v187
    %v250 = vmul.f32 %v154, %v191
    %v251 = vmul.f32 %v155, %v195
    %v252 = vmul.f32 %v156, %v199
    %v253 = vmul.f32 %v157, %v203
    %v254 = vmul.f32 %v158, %v207
    %v255 = vmul.f32 %v159, %v211
    %v256 = vmul.f32 %v160, %v215
    %v257 = vmul.f32 %v161, %v219
    %v258 = vmul.f32 %v162, %v223
    %v259 = vmul.f32 %v163, %v227
    %276 = vrot.lane.b32.xlu0 %v244, 112
    %v277 = vpop.permute.xlu0 %276
    %278 = vrot.lane.b32.xlu0 %v245, 112
    %v279 = vpop.permute.xlu0 %278
    %280 = vrot.lane.b32.xlu0 %v246, 112
    %v281 = vpop.permute.xlu0 %280
    %282 = vrot.lane.b32.xlu0 %v247, 112
    %v283 = vpop.permute.xlu0 %282
    %284 = vrot.lane.b32.xlu0 %v248, 112
    %v285 = vpop.permute.xlu0 %284
    %286 = vrot.lane.b32.xlu0 %v249, 112
    %v287 = vpop.permute.xlu0 %286
    %288 = vrot.lane.b32.xlu0 %v250, 112
    %v289 = vpop.permute.xlu0 %288
    %290 = vrot.lane.b32.xlu0 %v251, 112
    %v291 = vpop.permute.xlu0 %290
    %292 = vrot.lane.b32.xlu0 %v252, 112
    %v293 = vpop.permute.xlu0 %292
    %294 = vrot.lane.b32.xlu0 %v253, 112
    %v295 = vpop.permute.xlu0 %294
    %296 = vrot.lane.b32.xlu0 %v254, 112
    %v297 = vpop.permute.xlu0 %296
    %298 = vrot.lane.b32.xlu0 %v255, 112
    %v299 = vpop.permute.xlu0 %298
    %300 = vrot.lane.b32.xlu0 %v256, 112
    %v301 = vpop.permute.xlu0 %300
    %302 = vrot.lane.b32.xlu0 %v257, 112
    %v303 = vpop.permute.xlu0 %302
    %304 = vrot.lane.b32.xlu0 %v258, 112
    %v305 = vpop.permute.xlu0 %304
    %306 = vrot.lane.b32.xlu0 %v259, 112
    %v307 = vpop.permute.xlu0 %306
    %v324 = vsub.f32 %v244, %v277
    %v325 = vsub.f32 %v245, %v279
    %v326 = vsub.f32 %v246, %v281
    %v327 = vsub.f32 %v247, %v283
    %v328 = vsub.f32 %v248, %v285
    %v329 = vsub.f32 %v249, %v287
    %v330 = vsub.f32 %v250, %v289
    %v331 = vsub.f32 %v251, %v291
    %v332 = vsub.f32 %v252, %v293
    %v333 = vsub.f32 %v253, %v295
    %v334 = vsub.f32 %v254, %v297
    %v335 = vsub.f32 %v255, %v299
    %v336 = vsub.f32 %v256, %v301
    %v337 = vsub.f32 %v257, %v303
    %v338 = vsub.f32 %v258, %v305
    %v339 = vsub.f32 %v259, %v307
    %vm340 = vcmask 125952
    %341 = vst.msk [vmem:[#allocation7] sm:$0xf] %vm340, %v324
    %342 = vst.msk [vmem:[#allocation7 + $0x4] sm:$0xf] %vm340, %v325
    %343 = vst.msk [vmem:[#allocation7 + $0x8] sm:$0xf] %vm340, %v326
    %344 = vst.msk [vmem:[#allocation7 + $0xc] sm:$0xf] %vm340, %v327
    %345 = vst.msk [vmem:[#allocation7 + $0x10] sm:$0xf] %vm340, %v328
    %346 = vst.msk [vmem:[#allocation7 + $0x14] sm:$0xf] %vm340, %v329
    %347 = vst.msk [vmem:[#allocation7 + $0x18] sm:$0xf] %vm340, %v330
    %348 = vst.msk [vmem:[#allocation7 + $0x1c] sm:$0xf] %vm340, %v331
    %349 = vst.msk [vmem:[#allocation7 + $0x20] sm:$0xf] %vm340, %v332
    %350 = vst.msk [vmem:[#allocation7 + $0x24] sm:$0xf] %vm340, %v333
    %351 = vst.msk [vmem:[#allocation7 + $0x28] sm:$0xf] %vm340, %v334
    %352 = vst.msk [vmem:[#allocation7 + $0x2c] sm:$0xf] %vm340, %v335
    %353 = vst.msk [vmem:[#allocation7 + $0x30] sm:$0xf] %vm340, %v336
    %354 = vst.msk [vmem:[#allocation7 + $0x34] sm:$0xf] %vm340, %v337
    %355 = vst.msk [vmem:[#allocation7 + $0x38] sm:$0xf] %vm340, %v338
    %356 = vst.msk [vmem:[#allocation7 + $0x3c] sm:$0xf] %vm340, %v339
    %357 = vrot.lane.b32.xlu0 %v167, 16
    %v358 = vpop.permute.xlu0 %357
    %359 = vrot.lane.b32.xlu0 %v171, 16
    %v360 = vpop.permute.xlu0 %359
    %361 = vrot.lane.b32.xlu0 %v175, 16
    %v362 = vpop.permute.xlu0 %361
    %363 = vrot.lane.b32.xlu0 %v179, 16
    %v364 = vpop.permute.xlu0 %363
    %365 = vrot.lane.b32.xlu0 %v183, 16
    %v366 = vpop.permute.xlu0 %365
    %367 = vrot.lane.b32.xlu0 %v187, 16
    %v368 = vpop.permute.xlu0 %367
    %369 = vrot.lane.b32.xlu0 %v191, 16
    %v370 = vpop.permute.xlu0 %369
    %371 = vrot.lane.b32.xlu0 %v195, 16
    %v372 = vpop.permute.xlu0 %371
    %373 = vrot.lane.b32.xlu0 %v199, 16
    %v374 = vpop.permute.xlu0 %373
    %375 = vrot.lane.b32.xlu0 %v203, 16
    %v376 = vpop.permute.xlu0 %375
    %377 = vrot.lane.b32.xlu0 %v207, 16
    %v378 = vpop.permute.xlu0 %377
    %379 = vrot.lane.b32.xlu0 %v211, 16
    %v380 = vpop.permute.xlu0 %379
    %381 = vrot.lane.b32.xlu0 %v215, 16
    %v382 = vpop.permute.xlu0 %381
    %383 = vrot.lane.b32.xlu0 %v219, 16
    %v384 = vpop.permute.xlu0 %383
    %385 = vrot.lane.b32.xlu0 %v223, 16
    %v386 = vpop.permute.xlu0 %385
    %387 = vrot.lane.b32.xlu0 %v227, 16
    %v388 = vpop.permute.xlu0 %387
    %v405 = vmul.f32 %v148, %v358
    %v406 = vmul.f32 %v149, %v360
    %v407 = vmul.f32 %v150, %v362
    %v408 = vmul.f32 %v151, %v364
    %v409 = vmul.f32 %v152, %v366
    %v410 = vmul.f32 %v153, %v368
    %v411 = vmul.f32 %v154, %v370
    %v412 = vmul.f32 %v155, %v372
    %v413 = vmul.f32 %v156, %v374
    %v414 = vmul.f32 %v157, %v376
    %v415 = vmul.f32 %v158, %v378
    %v416 = vmul.f32 %v159, %v380
    %v417 = vmul.f32 %v160, %v382
    %v418 = vmul.f32 %v161, %v384
    %v419 = vmul.f32 %v162, %v386
    %v420 = vmul.f32 %v163, %v388
    %421 = vrot.lane.b32.xlu0 %v167, 112
    %v422 = vpop.permute.xlu0 %421
    %423 = vrot.lane.b32.xlu0 %v171, 112
    %v424 = vpop.permute.xlu0 %423
    %425 = vrot.lane.b32.xlu0 %v175, 112
    %v426 = vpop.permute.xlu0 %425
    %427 = vrot.lane.b32.xlu0 %v179, 112
    %v428 = vpop.permute.xlu0 %427
    %429 = vrot.lane.b32.xlu0 %v183, 112
    %v430 = vpop.permute.xlu0 %429
    %431 = vrot.lane.b32.xlu0 %v187, 112
    %v432 = vpop.permute.xlu0 %431
    %433 = vrot.lane.b32.xlu0 %v191, 112
    %v434 = vpop.permute.xlu0 %433
    %435 = vrot.lane.b32.xlu0 %v195, 112
    %v436 = vpop.permute.xlu0 %435
    %437 = vrot.lane.b32.xlu0 %v199, 112
    %v438 = vpop.permute.xlu0 %437
    %439 = vrot.lane.b32.xlu0 %v203, 112
    %v440 = vpop.permute.xlu0 %439
    %441 = vrot.lane.b32.xlu0 %v207, 112
    %v442 = vpop.permute.xlu0 %441
    %443 = vrot.lane.b32.xlu0 %v211, 112
    %v444 = vpop.permute.xlu0 %443
    %445 = vrot.lane.b32.xlu0 %v215, 112
    %v446 = vpop.permute.xlu0 %445
    %447 = vrot.lane.b32.xlu0 %v219, 112
    %v448 = vpop.permute.xlu0 %447
    %449 = vrot.lane.b32.xlu0 %v223, 112
    %v450 = vpop.permute.xlu0 %449
    %451 = vrot.lane.b32.xlu0 %v227, 112
    %v452 = vpop.permute.xlu0 %451
    %v469 = vmul.f32 %v148, %v422
    %v470 = vmul.f32 %v149, %v424
    %v471 = vmul.f32 %v150, %v426
    %v472 = vmul.f32 %v151, %v428
    %v473 = vmul.f32 %v152, %v430
    %v474 = vmul.f32 %v153, %v432
    %v475 = vmul.f32 %v154, %v434
    %v476 = vmul.f32 %v155, %v436
    %v477 = vmul.f32 %v156, %v438
    %v478 = vmul.f32 %v157, %v440
    %v479 = vmul.f32 %v158, %v442
    %v480 = vmul.f32 %v159, %v444
    %v481 = vmul.f32 %v160, %v446
    %v482 = vmul.f32 %v161, %v448
    %v483 = vmul.f32 %v162, %v450
    %v484 = vmul.f32 %v163, %v452
    %501 = vrot.lane.b32.xlu0 %v469, 16
    %v502 = vpop.permute.xlu0 %501
    %503 = vrot.lane.b32.xlu0 %v470, 16
    %v504 = vpop.permute.xlu0 %503
    %505 = vrot.lane.b32.xlu0 %v471, 16
    %v506 = vpop.permute.xlu0 %505
    %507 = vrot.lane.b32.xlu0 %v472, 16
    %v508 = vpop.permute.xlu0 %507
    %509 = vrot.lane.b32.xlu0 %v473, 16
    %v510 = vpop.permute.xlu0 %509
    %511 = vrot.lane.b32.xlu0 %v474, 16
    %v512 = vpop.permute.xlu0 %511
    %513 = vrot.lane.b32.xlu0 %v475, 16
    %v514 = vpop.permute.xlu0 %513
    %515 = vrot.lane.b32.xlu0 %v476, 16
    %v516 = vpop.permute.xlu0 %515
    %517 = vrot.lane.b32.xlu0 %v477, 16
    %v518 = vpop.permute.xlu0 %517
    %519 = vrot.lane.b32.xlu0 %v478, 16
    %v520 = vpop.permute.xlu0 %519
    %521 = vrot.lane.b32.xlu0 %v479, 16
    %v522 = vpop.permute.xlu0 %521
    %523 = vrot.lane.b32.xlu0 %v480, 16
    %v524 = vpop.permute.xlu0 %523
    %525 = vrot.lane.b32.xlu0 %v481, 16
    %v526 = vpop.permute.xlu0 %525
    %527 = vrot.lane.b32.xlu0 %v482, 16
    %v528 = vpop.permute.xlu0 %527
    %529 = vrot.lane.b32.xlu0 %v483, 16
    %v530 = vpop.permute.xlu0 %529
    %531 = vrot.lane.b32.xlu0 %v484, 16
    %v532 = vpop.permute.xlu0 %531
    %v549 = vadd.f32 %v405, %v502
    %v550 = vadd.f32 %v406, %v504
    %v551 = vadd.f32 %v407, %v506
    %v552 = vadd.f32 %v408, %v508
    %v553 = vadd.f32 %v409, %v510
    %v554 = vadd.f32 %v410, %v512
    %v555 = vadd.f32 %v411, %v514
    %v556 = vadd.f32 %v412, %v516
    %v557 = vadd.f32 %v413, %v518
    %v558 = vadd.f32 %v414, %v520
    %v559 = vadd.f32 %v415, %v522
    %v560 = vadd.f32 %v416, %v524
    %v561 = vadd.f32 %v417, %v526
    %v562 = vadd.f32 %v418, %v528
    %v563 = vadd.f32 %v419, %v530
    %v564 = vadd.f32 %v420, %v532
    %vm565 = vcmask 257152
    %566 = vst.msk [vmem:[#allocation7] sm:$0xf] %vm565, %v549
    %567 = vst.msk [vmem:[#allocation7 + $0x4] sm:$0xf] %vm565, %v550
    %568 = vst.msk [vmem:[#allocation7 + $0x8] sm:$0xf] %vm565, %v551
    %569 = vst.msk [vmem:[#allocation7 + $0xc] sm:$0xf] %vm565, %v552
    %570 = vst.msk [vmem:[#allocation7 + $0x10] sm:$0xf] %vm565, %v553
    %571 = vst.msk [vmem:[#allocation7 + $0x14] sm:$0xf] %vm565, %v554
    %572 = vst.msk [vmem:[#allocation7 + $0x18] sm:$0xf] %vm565, %v555
    %573 = vst.msk [vmem:[#allocation7 + $0x1c] sm:$0xf] %vm565, %v556
    %574 = vst.msk [vmem:[#allocation7 + $0x20] sm:$0xf] %vm565, %v557
    %575 = vst.msk [vmem:[#allocation7 + $0x24] sm:$0xf] %vm565, %v558
    %576 = vst.msk [vmem:[#allocation7 + $0x28] sm:$0xf] %vm565, %v559
    %577 = vst.msk [vmem:[#allocation7 + $0x2c] sm:$0xf] %vm565, %v560
    %578 = vst.msk [vmem:[#allocation7 + $0x30] sm:$0xf] %vm565, %v561
    %579 = vst.msk [vmem:[#allocation7 + $0x34] sm:$0xf] %vm565, %v562
    %580 = vst.msk [vmem:[#allocation7 + $0x38] sm:$0xf] %vm565, %v563
    %581 = vst.msk [vmem:[#allocation7 + $0x3c] sm:$0xf] %vm565, %v564
    %v582 = vld [vmem:[#allocation5] sm:$0x3]
    %v583 = vld [vmem:[#allocation5 + $0x2] sm:$0x3]
    %v584 = vld [vmem:[#allocation5 + $0x4] sm:$0x3]
    %v585 = vld [vmem:[#allocation5 + $0x6] sm:$0x3]
    %v586 = vld [vmem:[#allocation5 + $0x8] sm:$0x3]
    %v587 = vld [vmem:[#allocation5 + $0xa] sm:$0x3]
    %v588 = vld [vmem:[#allocation5 + $0xc] sm:$0x3]
    %v589 = vld [vmem:[#allocation5 + $0xe] sm:$0x3]
    %v590 = vld [vmem:[#allocation5 + $0x10] sm:$0x3]
    %v591 = vld [vmem:[#allocation5 + $0x12] sm:$0x3]
    %v592 = vld [vmem:[#allocation5 + $0x14] sm:$0x3]
    %v593 = vld [vmem:[#allocation5 + $0x16] sm:$0x3]
    %v594 = vld [vmem:[#allocation5 + $0x18] sm:$0x3]
    %v595 = vld [vmem:[#allocation5 + $0x1a] sm:$0x3]
    %v596 = vld [vmem:[#allocation5 + $0x1c] sm:$0x3]
    %v597 = vld [vmem:[#allocation5 + $0x1e] sm:$0x3]
    %v598 = vmul.f32 %v582, %v167
    %v599 = vmul.f32 %v583, %v171
    %v600 = vmul.f32 %v584, %v175
    %v601 = vmul.f32 %v585, %v179
    %v602 = vmul.f32 %v586, %v183
    %v603 = vmul.f32 %v587, %v187
    %v604 = vmul.f32 %v588, %v191
    %v605 = vmul.f32 %v589, %v195
    %v606 = vmul.f32 %v590, %v199
    %v607 = vmul.f32 %v591, %v203
    %v608 = vmul.f32 %v592, %v207
    %v609 = vmul.f32 %v593, %v211
    %v610 = vmul.f32 %v594, %v215
    %v611 = vmul.f32 %v595, %v219
    %v612 = vmul.f32 %v596, %v223
    %v613 = vmul.f32 %v597, %v227
    %630 = vrot.lane.b32.xlu0 %v598, 112
    %v631 = vpop.permute.xlu0 %630
    %632 = vrot.lane.b32.xlu0 %v599, 112
    %v633 = vpop.permute.xlu0 %632
    %634 = vrot.lane.b32.xlu0 %v600, 112
    %v635 = vpop.permute.xlu0 %634
    %636 = vrot.lane.b32.xlu0 %v601, 112
    %v637 = vpop.permute.xlu0 %636
    %638 = vrot.lane.b32.xlu0 %v602, 112
    %v639 = vpop.permute.xlu0 %638
    %640 = vrot.lane.b32.xlu0 %v603, 112
    %v641 = vpop.permute.xlu0 %640
    %642 = vrot.lane.b32.xlu0 %v604, 112
    %v643 = vpop.permute.xlu0 %642
    %644 = vrot.lane.b32.xlu0 %v605, 112
    %v645 = vpop.permute.xlu0 %644
    %646 = vrot.lane.b32.xlu0 %v606, 112
    %v647 = vpop.permute.xlu0 %646
    %648 = vrot.lane.b32.xlu0 %v607, 112
    %v649 = vpop.permute.xlu0 %648
    %650 = vrot.lane.b32.xlu0 %v608, 112
    %v651 = vpop.permute.xlu0 %650
    %652 = vrot.lane.b32.xlu0 %v609, 112
    %v653 = vpop.permute.xlu0 %652
    %654 = vrot.lane.b32.xlu0 %v610, 112
    %v655 = vpop.permute.xlu0 %654
    %656 = vrot.lane.b32.xlu0 %v611, 112
    %v657 = vpop.permute.xlu0 %656
    %658 = vrot.lane.b32.xlu0 %v612, 112
    %v659 = vpop.permute.xlu0 %658
    %660 = vrot.lane.b32.xlu0 %v613, 112
    %v661 = vpop.permute.xlu0 %660
    %v678 = vsub.f32 %v598, %v631
    %v679 = vsub.f32 %v599, %v633
    %v680 = vsub.f32 %v600, %v635
    %v681 = vsub.f32 %v601, %v637
    %v682 = vsub.f32 %v602, %v639
    %v683 = vsub.f32 %v603, %v641
    %v684 = vsub.f32 %v604, %v643
    %v685 = vsub.f32 %v605, %v645
    %v686 = vsub.f32 %v606, %v647
    %v687 = vsub.f32 %v607, %v649
    %v688 = vsub.f32 %v608, %v651
    %v689 = vsub.f32 %v609, %v653
    %v690 = vsub.f32 %v610, %v655
    %v691 = vsub.f32 %v611, %v657
    %v692 = vsub.f32 %v612, %v659
    %v693 = vsub.f32 %v613, %v661
    %vm694 = vcmask 123904
    %695 = vst.msk [vmem:[#allocation8] sm:$0x3] %vm694, %v678
    %696 = vst.msk [vmem:[#allocation8 + $0x2] sm:$0x3] %vm694, %v679
    %697 = vst.msk [vmem:[#allocation8 + $0x4] sm:$0x3] %vm694, %v680
    %698 = vst.msk [vmem:[#allocation8 + $0x6] sm:$0x3] %vm694, %v681
    %699 = vst.msk [vmem:[#allocation8 + $0x8] sm:$0x3] %vm694, %v682
    %700 = vst.msk [vmem:[#allocation8 + $0xa] sm:$0x3] %vm694, %v683
    %701 = vst.msk [vmem:[#allocation8 + $0xc] sm:$0x3] %vm694, %v684
    %702 = vst.msk [vmem:[#allocation8 + $0xe] sm:$0x3] %vm694, %v685
    %703 = vst.msk [vmem:[#allocation8 + $0x10] sm:$0x3] %vm694, %v686
    %704 = vst.msk [vmem:[#allocation8 + $0x12] sm:$0x3] %vm694, %v687
    %705 = vst.msk [vmem:[#allocation8 + $0x14] sm:$0x3] %vm694, %v688
    %706 = vst.msk [vmem:[#allocation8 + $0x16] sm:$0x3] %vm694, %v689
    %707 = vst.msk [vmem:[#allocation8 + $0x18] sm:$0x3] %vm694, %v690
    %708 = vst.msk [vmem:[#allocation8 + $0x1a] sm:$0x3] %vm694, %v691
    %709 = vst.msk [vmem:[#allocation8 + $0x1c] sm:$0x3] %vm694, %v692
    %710 = vst.msk [vmem:[#allocation8 + $0x1e] sm:$0x3] %vm694, %v693
    %v711 = vmul.f32 %v582, %v358
    %v712 = vmul.f32 %v583, %v360
    %v713 = vmul.f32 %v584, %v362
    %v714 = vmul.f32 %v585, %v364
    %v715 = vmul.f32 %v586, %v366
    %v716 = vmul.f32 %v587, %v368
    %v717 = vmul.f32 %v588, %v370
    %v718 = vmul.f32 %v589, %v372
    %v719 = vmul.f32 %v590, %v374
    %v720 = vmul.f32 %v591, %v376
    %v721 = vmul.f32 %v592, %v378
    %v722 = vmul.f32 %v593, %v380
    %v723 = vmul.f32 %v594, %v382
    %v724 = vmul.f32 %v595, %v384
    %v725 = vmul.f32 %v596, %v386
    %v726 = vmul.f32 %v597, %v388
    %v727 = vmul.f32 %v582, %v422
    %v728 = vmul.f32 %v583, %v424
    %v729 = vmul.f32 %v584, %v426
    %v730 = vmul.f32 %v585, %v428
    %v731 = vmul.f32 %v586, %v430
    %v732 = vmul.f32 %v587, %v432
    %v733 = vmul.f32 %v588, %v434
    %v734 = vmul.f32 %v589, %v436
    %v735 = vmul.f32 %v590, %v438
    %v736 = vmul.f32 %v591, %v440
    %v737 = vmul.f32 %v592, %v442
    %v738 = vmul.f32 %v593, %v444
    %v739 = vmul.f32 %v594, %v446
    %v740 = vmul.f32 %v595, %v448
    %v741 = vmul.f32 %v596, %v450
    %v742 = vmul.f32 %v597, %v452
    %759 = vrot.lane.b32.xlu0 %v727, 16
    %v760 = vpop.permute.xlu0 %759
    %761 = vrot.lane.b32.xlu0 %v728, 16
    %v762 = vpop.permute.xlu0 %761
    %763 = vrot.lane.b32.xlu0 %v729, 16
    %v764 = vpop.permute.xlu0 %763
    %765 = vrot.lane.b32.xlu0 %v730, 16
    %v766 = vpop.permute.xlu0 %765
    %767 = vrot.lane.b32.xlu0 %v731, 16
    %v768 = vpop.permute.xlu0 %767
    %769 = vrot.lane.b32.xlu0 %v732, 16
    %v770 = vpop.permute.xlu0 %769
    %771 = vrot.lane.b32.xlu0 %v733, 16
    %v772 = vpop.permute.xlu0 %771
    %773 = vrot.lane.b32.xlu0 %v734, 16
    %v774 = vpop.permute.xlu0 %773
    %775 = vrot.lane.b32.xlu0 %v735, 16
    %v776 = vpop.permute.xlu0 %775
    %777 = vrot.lane.b32.xlu0 %v736, 16
    %v778 = vpop.permute.xlu0 %777
    %779 = vrot.lane.b32.xlu0 %v737, 16
    %v780 = vpop.permute.xlu0 %779
    %781 = vrot.lane.b32.xlu0 %v738, 16
    %v782 = vpop.permute.xlu0 %781
    %783 = vrot.lane.b32.xlu0 %v739, 16
    %v784 = vpop.permute.xlu0 %783
    %785 = vrot.lane.b32.xlu0 %v740, 16
    %v786 = vpop.permute.xlu0 %785
    %787 = vrot.lane.b32.xlu0 %v741, 16
    %v788 = vpop.permute.xlu0 %787
    %789 = vrot.lane.b32.xlu0 %v742, 16
    %v790 = vpop.permute.xlu0 %789
    %v807 = vadd.f32 %v711, %v760
    %v808 = vadd.f32 %v712, %v762
    %v809 = vadd.f32 %v713, %v764
    %v810 = vadd.f32 %v714, %v766
    %v811 = vadd.f32 %v715, %v768
    %v812 = vadd.f32 %v716, %v770
    %v813 = vadd.f32 %v717, %v772
    %v814 = vadd.f32 %v718, %v774
    %v815 = vadd.f32 %v719, %v776
    %v816 = vadd.f32 %v720, %v778
    %v817 = vadd.f32 %v721, %v780
    %v818 = vadd.f32 %v722, %v782
    %v819 = vadd.f32 %v723, %v784
    %v820 = vadd.f32 %v724, %v786
    %v821 = vadd.f32 %v725, %v788
    %v822 = vadd.f32 %v726, %v790
    %vm823 = vcmask 255104
    %824 = vst.msk [vmem:[#allocation8] sm:$0x3] %vm823, %v807
    %825 = vst.msk [vmem:[#allocation8 + $0x2] sm:$0x3] %vm823, %v808
    %826 = vst.msk [vmem:[#allocation8 + $0x4] sm:$0x3] %vm823, %v809
    %827 = vst.msk [vmem:[#allocation8 + $0x6] sm:$0x3] %vm823, %v810
    %828 = vst.msk [vmem:[#allocation8 + $0x8] sm:$0x3] %vm823, %v811
    %829 = vst.msk [vmem:[#allocation8 + $0xa] sm:$0x3] %vm823, %v812
    %830 = vst.msk [vmem:[#allocation8 + $0xc] sm:$0x3] %vm823, %v813
    %831 = vst.msk [vmem:[#allocation8 + $0xe] sm:$0x3] %vm823, %v814
    %832 = vst.msk [vmem:[#allocation8 + $0x10] sm:$0x3] %vm823, %v815
    %833 = vst.msk [vmem:[#allocation8 + $0x12] sm:$0x3] %vm823, %v816
    %834 = vst.msk [vmem:[#allocation8 + $0x14] sm:$0x3] %vm823, %v817
    %835 = vst.msk [vmem:[#allocation8 + $0x16] sm:$0x3] %vm823, %v818
    %836 = vst.msk [vmem:[#allocation8 + $0x18] sm:$0x3] %vm823, %v819
    %837 = vst.msk [vmem:[#allocation8 + $0x1a] sm:$0x3] %vm823, %v820
    %838 = vst.msk [vmem:[#allocation8 + $0x1c] sm:$0x3] %vm823, %v821
    %839 = vst.msk [vmem:[#allocation8 + $0x1e] sm:$0x3] %vm823, %v822
    // Predicated region
    $region22: #{tpu_custom_call.1} parent=1 // pred_check
      _
    $region23: #{tpu_custom_call.1} parent=1 // pred_check_branch
      %841 = sbr.rel (0) target = $region25
    $region24: #{tpu_custom_call.1} parent=1 // pred_region
      %s843 = ssub.s32 1024, 1024
      %844 = vsyncadd [#allocation4], %s843
      %s845 = sshll.u32 [#allocation7], 4
      %s846 = int_to_ptr.vmem [resolvable:$true] %s845
      %851 = dma.vmem_to_hbm [thread:$0]  %s846, 1024, %s3, [#allocation4], 64, 64, 4
    $region25: #{tpu_custom_call.1} parent=1 // pred_fallthru
      _
    // Predicated region
    $region26: #{tpu_custom_call.1} parent=1 // pred_check
      _
    $region27: #{tpu_custom_call.1} parent=1 // pred_check_branch
      %853 = sbr.rel (0) target = $region29
    $region28: #{tpu_custom_call.1} parent=1 // pred_region
      %s855 = ssub.s32 512, 512
      %856 = vsyncadd [#allocation9], %s855
      %s857 = sshll.u32 [#allocation8], 4
      %s858 = int_to_ptr.vmem [resolvable:$true] %s857
      %863 = dma.vmem_to_hbm [thread:$0]  %s858, 512, %s4, [#allocation9], 32, 32, 2
    $region29: #{tpu_custom_call.1} parent=1 // pred_fallthru
      _
    // Predicated region
    $region30: #{tpu_custom_call.1} parent=1 // pred_check
      _
    $region31: #{tpu_custom_call.1} parent=1 // pred_check_branch
      %865 = sbr.rel (0) target = $region33
    $region32: #{tpu_custom_call.1} parent=1 // pred_region
      %866 = dma.done [#allocation4], 1024
    $region33: #{tpu_custom_call.1} parent=1 // pred_fallthru
      _
    // Predicated region
    $region34: #{tpu_custom_call.1} parent=1 // pred_check
      _
    $region35: #{tpu_custom_call.1} parent=1 // pred_check_branch
      %868 = sbr.rel (0) target = $region37
    $region36: #{tpu_custom_call.1} parent=1 // pred_region
      %869 = dma.done [#allocation9], 512
    $region37: #{tpu_custom_call.1} parent=1 // pred_fallthru
      _
    %870 = vsyncpa [#allocation3], 1
    %871 = vsyncpa [#allocation6], 1
    %872 = vsyncpa [#allocation4], 1
    %873 = vsyncpa [#allocation9], 1

</llo_original>
